<compile_context>
chip_gen: v5e
topology: v5e:2x2
jax: 0.10.0
libtpu: 0.0.40
codegen_flags: <defaults>
</compile_context>

<pallas_src>
import functools

import jax
import jax.numpy as jnp
from jax.experimental import pallas as pl
from jax.experimental.pallas import tpu as pltpu

_LANE = 128
_SUBLANE = 8


def _round_up(x, m):
    return ((x + m - 1) // m) * m


def _full_spec(shape):
    # Full-array block (single grid point) -> exempt from (8,128) tiling rule.
    return pl.BlockSpec(shape, lambda: (0,) * len(shape))


# ----------------------------------------------------------------------------
# Fused kernel: all GCN layers + bias + ReLU + final log_softmax
# ----------------------------------------------------------------------------
def _make_fused_kernel(num_layers, fins, fouts, valid_out_cols):
    """Builds a kernel with refs: (a, x, w0, b0, w1, b1, ..., o).

    a: [Np, Np] bf16   x: [Np, F0p] bf16   w_i: [Fi_p, Fo_p] bf16
    b_i: [1, Fo_p] f32   o: [Np, Flast_p] f32
    """

    def kernel(*refs):
        a_ref, x_ref = refs[0], refs[1]
        o_ref = refs[-1]
        wb = refs[2:-1]

        a = a_ref[...]          # bf16, resident for all layers
        h = x_ref[...]          # bf16 activations

        out = None
        for li in range(num_layers):
            w = wb[2 * li][...]       # bf16
            b = wb[2 * li + 1][...]   # f32 [1, Fo_p]
            if fins[li] < fouts[li]:
                # (A @ H) @ W : adjacency matmul over Fin columns
                ah = jnp.dot(a, h, preferred_element_type=jnp.float32)
                out = jnp.dot(ah.astype(jnp.bfloat16), w,
                              preferred_element_type=jnp.float32)
            else:
                # A @ (H @ W) : adjacency matmul over Fout columns
                hw = jnp.dot(h, w, preferred_element_type=jnp.float32)
                out = jnp.dot(a, hw.astype(jnp.bfloat16),
                              preferred_element_type=jnp.float32)
            out = out + b  # f32 broadcast over rows
            if li < num_layers - 1:
                out = jnp.maximum(out, 0.0)
                # TODO(synk): training-mode dropout not implemented (identity).
                h = out.astype(jnp.bfloat16)

        # Final log_softmax over the REAL output columns (mask the lane padding).
        col = jax.lax.broadcasted_iota(jnp.int32, out.shape, 1)
        valid = col < valid_out_cols
        xm = jnp.where(valid, out, -1e30)
        m = jnp.max(xm, axis=1, keepdims=True)
        s = xm - m
        e = jnp.where(valid, jnp.exp(s), 0.0)
        lse = jnp.log(jnp.sum(e, axis=1, keepdims=True))
        o_ref[...] = (s - lse).astype(o_ref.dtype)

    return kernel


# ----------------------------------------------------------------------------
# Wrapper: padding, bf16 casts, single pallas_call
# ----------------------------------------------------------------------------
def fused_gcn_forward(a_norm, features, params):
    n = features.shape[0]
    n_pad = max(_round_up(n, _SUBLANE), _SUBLANE)

    fins = [features.shape[1]] + [w.shape[1] for (w, _) in params[:-1]]
    fouts = [w.shape[1] for (w, _) in params]
    fins_p = [max(_round_up(f, _LANE), _LANE) for f in fins]
    fouts_p = [max(_round_up(f, _LANE), _LANE) for f in fouts]
    num_layers = len(params)

    # bf16 MXU inputs, zero-padded to lane-dense shapes.
    a_p = jnp.zeros((n_pad, n_pad), jnp.bfloat16)
    a_p = a_p.at[:n, :n].set(a_norm.astype(jnp.bfloat16))
    x_p = jnp.zeros((n_pad, fins_p[0]), jnp.bfloat16)
    x_p = x_p.at[:n, :fins[0]].set(features.astype(jnp.bfloat16))

    args = [a_p, x_p]
    in_specs = [_full_spec(a_p.shape), _full_spec(x_p.shape)]
    for li, (w, b) in enumerate(params):
        w_p = jnp.zeros((fins_p[li], fouts_p[li]), jnp.bfloat16)
        w_p = w_p.at[:fins[li], :fouts[li]].set(w.astype(jnp.bfloat16))
        b_p = jnp.zeros((1, fouts_p[li]), jnp.float32)
        b_p = b_p.at[0, :fouts[li]].set(b.astype(jnp.float32))
        args += [w_p, b_p]
        in_specs += [_full_spec(w_p.shape), _full_spec(b_p.shape)]

    out_pad_shape = (n_pad, fouts_p[-1])

    # Advisory cost estimate for XLA scheduling around the custom call.
    flops = 0
    for li in range(num_layers):
        fi, fo = fins_p[li], fouts_p[li]
        flops += 2 * n_pad * fi * fo + 2 * n_pad * n_pad * min(fi, fo)
    bytes_acc = sum(int(a.size) * a.dtype.itemsize for a in args)
    bytes_acc += n_pad * fouts_p[-1] * 4
    cost = pl.CostEstimate(
        flops=int(flops),
        transcendentals=int(n_pad * fouts_p[-1] + n_pad),
        bytes_accessed=int(bytes_acc),
    )

    kernel = _make_fused_kernel(num_layers, fins, fouts, fouts[-1])

    out_pad = pl.pallas_call(
        kernel,
        out_shape=jax.ShapeDtypeStruct(out_pad_shape, jnp.float32),
        in_specs=in_specs,
        out_specs=_full_spec(out_pad_shape),
        cost_estimate=cost,
        compiler_params=pltpu.CompilerParams(vmem_limit_bytes=32 * 1024 * 1024),
    )(*args)

    return out_pad[:n, :fouts[-1]]


net_forward = jax.jit(fused_gcn_forward)


# ----------------------------------------------------------------------------
# Graph normalization (hoisted out of the forward pass) + param init
# ----------------------------------------------------------------------------
def build_norm_adj(edge_index, num_nodes):
    """Dense D^{-1/2} (A + I) D^{-1/2} from an edge_index [2, E] int array."""
    row = edge_index[0]
    col = edge_index[1]
    loop = jnp.arange(num_nodes, dtype=edge_index.dtype)
    row = jnp.concatenate([row, loop])
    col = jnp.concatenate([col, loop])
    adj = jnp.zeros((num_nodes, num_nodes), jnp.float32).at[row, col].add(1.0)
    deg = jnp.sum(adj, axis=1)
    dinv = jnp.where(deg > 0, 1.0 / jnp.sqrt(deg), 0.0)
    return dinv[:, None] * adj * dinv[None, :]


def init_params(key, in_channels, out_channels, input_layers):
    """Glorot-uniform weights, zero biases (deterministic)."""
    dims = [in_channels] + list(input_layers) + [out_channels]
    params = []
    for i in range(len(dims) - 1):
        key, sub = jax.random.split(key)
        fin, fout = dims[i], dims[i + 1]
        limit = jnp.sqrt(6.0 / (fin + fout))
        w = jax.random.uniform(sub, (fin, fout), jnp.float32, -limit, limit)
        b = jnp.zeros((fout,), jnp.float32)
        params.append((w, b))
    return params


# ----------------------------------------------------------------------------
if __name__ == "__main__":
    key = jax.random.PRNGKey(0)

    num_nodes = 32
    in_channels = 8
    out_channels = 4
    input_layers = [16, 16]
    num_edges = 64

    k_feat, k_src, k_dst, k_param = jax.random.split(key, 4)
    features = jax.random.normal(k_feat, (num_nodes, in_channels), jnp.float32)
    src = jax.random.randint(k_src, (num_edges,), 0, num_nodes, jnp.int32)
    dst = jax.random.randint(k_dst, (num_edges,), 0, num_nodes, jnp.int32)
    edge_index = jnp.stack([src, dst], axis=0)  # [2, E]

    params = init_params(k_param, in_channels, out_channels, input_layers)

    # Hoisted: adjacency normalization computed once, reused across forward calls.
    a_norm = build_norm_adj(edge_index, num_nodes)

    out = net_forward(a_norm, features, params)
    out = jax.block_until_ready(out)

    assert out.shape == (num_nodes, out_channels)
    # log_softmax rows should sum (in prob space) to ~1
    assert bool(jnp.all(jnp.abs(jnp.sum(jnp.exp(out), axis=1) - 1.0) < 1e-3))
    assert bool(jnp.all(jnp.isfinite(out)))

    print("KERNEL_OK")
</pallas_src>

<mosaic_0001>
module attributes {stable_mosaic.version = 11 : i64} {
  func.func @kernel(%arg0: memref<32x32xbf16, #tpu.memory_space<vmem>>, %arg1: memref<32x128xbf16, #tpu.memory_space<vmem>>, %arg2: memref<128x128xbf16, #tpu.memory_space<vmem>>, %arg3: memref<1x128xf32, #tpu.memory_space<vmem>>, %arg4: memref<128x128xbf16, #tpu.memory_space<vmem>>, %arg5: memref<1x128xf32, #tpu.memory_space<vmem>>, %arg6: memref<128x128xbf16, #tpu.memory_space<vmem>>, %arg7: memref<1x128xf32, #tpu.memory_space<vmem>>, %arg8: memref<32x128xf32, #tpu.memory_space<vmem>>) attributes {dimension_semantics = [], scalar_prefetch = 0 : i64, scratch_operands = 0 : i64, tpu.core_type = #tpu.core_type<tc>} {
    %c0 = arith.constant 0 : index
    %c0_0 = arith.constant 0 : index
    %0 = vector.load %arg0[%c0, %c0_0] : memref<32x32xbf16, #tpu.memory_space<vmem>>, vector<32x32xbf16>
    %c0_1 = arith.constant 0 : index
    %c0_2 = arith.constant 0 : index
    %1 = vector.load %arg1[%c0_1, %c0_2] : memref<32x128xbf16, #tpu.memory_space<vmem>>, vector<32x128xbf16>
    %c0_3 = arith.constant 0 : index
    %c0_4 = arith.constant 0 : index
    %2 = vector.load %arg2[%c0_3, %c0_4] : memref<128x128xbf16, #tpu.memory_space<vmem>>, vector<128x128xbf16>
    %c0_5 = arith.constant 0 : index
    %c0_6 = arith.constant 0 : index
    %3 = vector.load %arg3[%c0_5, %c0_6] : memref<1x128xf32, #tpu.memory_space<vmem>>, vector<1x128xf32>
    %cst = arith.constant dense<0.000000e+00> : vector<32x128xf32>
    %4 = tpu.matmul %0, %1, %cst {dimension_numbers = #tpu.dot_dimension_numbers<[1], [0], [0], [1], [0, 0, 1, 1], [], []>} : vector<32x32xbf16>, vector<32x128xbf16>, vector<32x128xf32> -> vector<32x128xf32>
    %5 = arith.truncf %4 : vector<32x128xf32> to vector<32x128xbf16>
    %cst_7 = arith.constant dense<0.000000e+00> : vector<32x128xf32>
    %6 = tpu.matmul %5, %2, %cst_7 {dimension_numbers = #tpu.dot_dimension_numbers<[1], [0], [0], [1], [0, 0, 1, 1], [], []>} : vector<32x128xbf16>, vector<128x128xbf16>, vector<32x128xf32> -> vector<32x128xf32>
    %7 = vector.broadcast %3 : vector<1x128xf32> to vector<32x128xf32>
    %8 = arith.addf %6, %7 : vector<32x128xf32>
    %cst_8 = arith.constant 0.000000e+00 : f32
    %9 = vector.broadcast %cst_8 : f32 to vector<32x128xf32>
    %10 = arith.maximumf %8, %9 : vector<32x128xf32>
    %11 = arith.truncf %10 : vector<32x128xf32> to vector<32x128xbf16>
    %c0_9 = arith.constant 0 : index
    %c0_10 = arith.constant 0 : index
    %12 = vector.load %arg4[%c0_9, %c0_10] : memref<128x128xbf16, #tpu.memory_space<vmem>>, vector<128x128xbf16>
    %c0_11 = arith.constant 0 : index
    %c0_12 = arith.constant 0 : index
    %13 = vector.load %arg5[%c0_11, %c0_12] : memref<1x128xf32, #tpu.memory_space<vmem>>, vector<1x128xf32>
    %cst_13 = arith.constant dense<0.000000e+00> : vector<32x128xf32>
    %14 = tpu.matmul %11, %12, %cst_13 {dimension_numbers = #tpu.dot_dimension_numbers<[1], [0], [0], [1], [0, 0, 1, 1], [], []>} : vector<32x128xbf16>, vector<128x128xbf16>, vector<32x128xf32> -> vector<32x128xf32>
    %15 = arith.truncf %14 : vector<32x128xf32> to vector<32x128xbf16>
    %cst_14 = arith.constant dense<0.000000e+00> : vector<32x128xf32>
    %16 = tpu.matmul %0, %15, %cst_14 {dimension_numbers = #tpu.dot_dimension_numbers<[1], [0], [0], [1], [0, 0, 1, 1], [], []>} : vector<32x32xbf16>, vector<32x128xbf16>, vector<32x128xf32> -> vector<32x128xf32>
    %17 = vector.broadcast %13 : vector<1x128xf32> to vector<32x128xf32>
    %18 = arith.addf %16, %17 : vector<32x128xf32>
    %cst_15 = arith.constant 0.000000e+00 : f32
    %19 = vector.broadcast %cst_15 : f32 to vector<32x128xf32>
    %20 = arith.maximumf %18, %19 : vector<32x128xf32>
    %21 = arith.truncf %20 : vector<32x128xf32> to vector<32x128xbf16>
    %c0_16 = arith.constant 0 : index
    %c0_17 = arith.constant 0 : index
    %22 = vector.load %arg6[%c0_16, %c0_17] : memref<128x128xbf16, #tpu.memory_space<vmem>>, vector<128x128xbf16>
    %c0_18 = arith.constant 0 : index
    %c0_19 = arith.constant 0 : index
    %23 = vector.load %arg7[%c0_18, %c0_19] : memref<1x128xf32, #tpu.memory_space<vmem>>, vector<1x128xf32>
    %cst_20 = arith.constant dense<0.000000e+00> : vector<32x128xf32>
    %24 = tpu.matmul %21, %22, %cst_20 {dimension_numbers = #tpu.dot_dimension_numbers<[1], [0], [0], [1], [0, 0, 1, 1], [], []>} : vector<32x128xbf16>, vector<128x128xbf16>, vector<32x128xf32> -> vector<32x128xf32>
    %25 = arith.truncf %24 : vector<32x128xf32> to vector<32x128xbf16>
    %cst_21 = arith.constant dense<0.000000e+00> : vector<32x128xf32>
    %26 = tpu.matmul %0, %25, %cst_21 {dimension_numbers = #tpu.dot_dimension_numbers<[1], [0], [0], [1], [0, 0, 1, 1], [], []>} : vector<32x32xbf16>, vector<32x128xbf16>, vector<32x128xf32> -> vector<32x128xf32>
    %27 = vector.broadcast %23 : vector<1x128xf32> to vector<32x128xf32>
    %28 = arith.addf %26, %27 : vector<32x128xf32>
    %29 = tpu.iota {dimensions = array<i32: 1>} : vector<32x128xi32>
    %c4_i32 = arith.constant 4 : i32
    %30 = vector.broadcast %c4_i32 : i32 to vector<32x128xi32>
    %31 = arith.cmpi slt, %29, %30 : vector<32x128xi32>
    %cst_22 = arith.constant -1.000000e+30 : f32
    %32 = vector.broadcast %cst_22 : f32 to vector<32x128xf32>
    %33 = arith.select %31, %28, %32 : vector<32x128xi1>, vector<32x128xf32>
    %cst_23 = arith.constant dense<0xFF800000> : vector<32xf32>
    %34 = vector.multi_reduction <maximumf>, %33, %cst_23 [1] : vector<32x128xf32> to vector<32xf32>
    %35 = vector.shape_cast %34 : vector<32xf32> to vector<32x1xf32>
    %36 = vector.broadcast %35 : vector<32x1xf32> to vector<32x128xf32>
    %37 = arith.subf %33, %36 : vector<32x128xf32>
    %38 = math.exp %37 : vector<32x128xf32>
    %cst_24 = arith.constant 0.000000e+00 : f32
    %39 = vector.broadcast %cst_24 : f32 to vector<32x128xf32>
    %40 = arith.select %31, %38, %39 : vector<32x128xi1>, vector<32x128xf32>
    %cst_25 = arith.constant dense<0.000000e+00> : vector<32xf32>
    %41 = vector.multi_reduction <add>, %40, %cst_25 [1] : vector<32x128xf32> to vector<32xf32>
    %42 = vector.shape_cast %41 : vector<32xf32> to vector<32x1xf32>
    %43 = math.log %42 : vector<32x1xf32>
    %44 = vector.broadcast %43 : vector<32x1xf32> to vector<32x128xf32>
    %45 = arith.subf %37, %44 : vector<32x128xf32>
    %c0_26 = arith.constant 0 : index
    %c0_27 = arith.constant 0 : index
    %46 = vector.load %arg8[%c0_26, %c0_27] : memref<32x128xf32, #tpu.memory_space<vmem>>, vector<32x128xf32>
    tpu.vector_store %arg8[%c0_26, %c0_27], %45 {strides = array<i32>} : memref<32x128xf32, #tpu.memory_space<vmem>>, vector<32x128xf32>,
    return
  }
}

</mosaic_0001>

<llo_original>
// kernel: fused_gcn_forward.1
$region0: #{fused_gcn_forward.1}
  #allocation0 [shape = 'u32[]', space=smem, size = 0x4, offset = 0x4, fixed_abs, tag = 'smem constant byte address 0x4 - core index']
  #allocation1 [shape = 'u32[72,128]{1,0:T(1,128)}', space=vmem, size = 0x9000, scoped, tag = 'internal scratch']
  %s0 = inlined_call_operand.vmem [shape: bf16[32,32], index: 0, kind: input, shape index: {}]
  %s1 = inlined_call_operand.vmem [shape: bf16[32,128], index: 1, kind: input, shape index: {}]
  %s2 = inlined_call_operand.vmem [shape: bf16[128,128], index: 2, kind: input, shape index: {}]
  %s3 = inlined_call_operand.vmem [shape: f32[1,128], index: 3, kind: input, shape index: {}]
  %s4 = inlined_call_operand.vmem [shape: bf16[128,128], index: 4, kind: input, shape index: {}]
  %s5 = inlined_call_operand.vmem [shape: f32[1,128], index: 5, kind: input, shape index: {}]
  %s6 = inlined_call_operand.vmem [shape: bf16[128,128], index: 6, kind: input, shape index: {}]
  %s7 = inlined_call_operand.vmem [shape: f32[1,128], index: 7, kind: input, shape index: {}]
  %s8 = inlined_call_operand.vmem [shape: f32[32,128], index: 8, kind: output, shape index: {}]
  %s9 = sld [smem:[#allocation0]]
  $region42: #{fused_gcn_forward.1} parent=0
    _
  %s11 = ssub.s32 1, %s9
  %s12 = scalar_select 0, %s11, %s9
  // Predicated region
  $region2: #{fused_gcn_forward.1} parent=0 // pred_check
    _
  $region3: #{fused_gcn_forward.1} parent=0 // pred_check_branch
    %14 = sbr.rel (0) target = $region5
  $region4: #{fused_gcn_forward.1} parent=0 // pred_region
    _
  $region5: #{fused_gcn_forward.1} parent=0 // pred_fallthru
    _
  // Predicated region
  $region6: #{fused_gcn_forward.1} parent=0 // pred_check
    _
  $region7: #{fused_gcn_forward.1} parent=0 // pred_check_branch
    %16 = sbr.rel (0) target = $region9
  $region8: #{fused_gcn_forward.1} parent=0 // pred_region
    _
  $region9: #{fused_gcn_forward.1} parent=0 // pred_fallthru
    _
  // Predicated region
  $region10: #{fused_gcn_forward.1} parent=0 // pred_check
    _
  $region11: #{fused_gcn_forward.1} parent=0 // pred_check_branch
    %18 = sbr.rel (0) target = $region13
  $region12: #{fused_gcn_forward.1} parent=0 // pred_region
    _
  $region13: #{fused_gcn_forward.1} parent=0 // pred_fallthru
    _
  // Predicated region
  $region14: #{fused_gcn_forward.1} parent=0 // pred_check
    _
  $region15: #{fused_gcn_forward.1} parent=0 // pred_check_branch
    %20 = sbr.rel (0) target = $region17
  $region16: #{fused_gcn_forward.1} parent=0 // pred_region
    _
  $region17: #{fused_gcn_forward.1} parent=0 // pred_fallthru
    _
  // Predicated region
  $region18: #{fused_gcn_forward.1} parent=0 // pred_check
    _
  $region19: #{fused_gcn_forward.1} parent=0 // pred_check_branch
    %22 = sbr.rel (0) target = $region21
  $region20: #{fused_gcn_forward.1} parent=0 // pred_region
    _
  $region21: #{fused_gcn_forward.1} parent=0 // pred_fallthru
    _
  // Predicated region
  $region22: #{fused_gcn_forward.1} parent=0 // pred_check
    _
  $region23: #{fused_gcn_forward.1} parent=0 // pred_check_branch
    %24 = sbr.rel (0) target = $region25
  $region24: #{fused_gcn_forward.1} parent=0 // pred_region
    _
  $region25: #{fused_gcn_forward.1} parent=0 // pred_fallthru
    _
  // Predicated region
  $region26: #{fused_gcn_forward.1} parent=0 // pred_check
    _
  $region27: #{fused_gcn_forward.1} parent=0 // pred_check_branch
    %26 = sbr.rel (0) target = $region29
  $region28: #{fused_gcn_forward.1} parent=0 // pred_region
    _
  $region29: #{fused_gcn_forward.1} parent=0 // pred_fallthru
    _
  // Predicated region
  $region30: #{fused_gcn_forward.1} parent=0 // pred_check
    _
  $region31: #{fused_gcn_forward.1} parent=0 // pred_check_branch
    %28 = sbr.rel (0) target = $region33
  $region32: #{fused_gcn_forward.1} parent=0 // pred_region
    _
  $region33: #{fused_gcn_forward.1} parent=0 // pred_fallthru
    _
  %v30 = vld [vmem:[%s0] sm:$0xf]
  %v31 = vld [vmem:[%s0 + $0x4] sm:$0xf]
  %v32 = vld [vmem:[%s0 + $0x8] sm:$0xf]
  %v33 = vld [vmem:[%s0 + $0xc] sm:$0xf]
  %v34 = vld [vmem:[%s1] sm:$0xf]
  %v35 = vld [vmem:[%s1 + $0x4] sm:$0xf]
  %v36 = vld [vmem:[%s1 + $0x8] sm:$0xf]
  %v37 = vld [vmem:[%s1 + $0xc] sm:$0xf]
  %v38 = vld [vmem:[%s2] sm:$0xf]
  %v39 = vld [vmem:[%s2 + $0x4] sm:$0xf]
  %v40 = vld [vmem:[%s2 + $0x8] sm:$0xf]
  %v41 = vld [vmem:[%s2 + $0xc] sm:$0xf]
  %v42 = vld [vmem:[%s2 + $0x10] sm:$0xf]
  %v43 = vld [vmem:[%s2 + $0x14] sm:$0xf]
  %v44 = vld [vmem:[%s2 + $0x18] sm:$0xf]
  %v45 = vld [vmem:[%s2 + $0x1c] sm:$0xf]
  %v46 = vld [vmem:[%s2 + $0x20] sm:$0xf]
  %v47 = vld [vmem:[%s2 + $0x24] sm:$0xf]
  %v48 = vld [vmem:[%s2 + $0x28] sm:$0xf]
  %v49 = vld [vmem:[%s2 + $0x2c] sm:$0xf]
  %v50 = vld [vmem:[%s2 + $0x30] sm:$0xf]
  %v51 = vld [vmem:[%s2 + $0x34] sm:$0xf]
  %v52 = vld [vmem:[%s2 + $0x38] sm:$0xf]
  %v53 = vld [vmem:[%s2 + $0x3c] sm:$0xf]
  %v54 = vld [vmem:[%s3] sm:$0x1]
  %v59 = vunpack.c.l.b16 %v30
  %v60 = vunpack.c.l.b16 %v31
  %v61 = vunpack.c.l.b16 %v32
  %v62 = vunpack.c.l.b16 %v33
  %v63 = vpack.c.b16 %v60, %v59
  %v64 = vpack.c.b16 %v62, %v61
  %v69 = vunpack.c.l.b16 %v34
  %v70 = vunpack.c.l.b16 %v35
  %v71 = vunpack.c.l.b16 %v36
  %v72 = vunpack.c.l.b16 %v37
  %v73 = vpack.c.b16 %v70, %v69
  %v74 = vpack.c.b16 %v72, %v71
  %vm77 = vcmask 261120
  %v79 = vsel %vm77, %v63, 0
  %v82 = vsel %vm77, %v64, 0
  %84 = vmatpush.bf16.msra.mxu0 0
  %85 = vmatpush.bf16.msra.mxu0 0
  %86 = vmatpush.bf16.msra.mxu0 0
  %87 = vmatpush.bf16.msra.mxu0 0
  %88 = vmatpush.bf16.msra.mxu0 0
  %89 = vmatpush.bf16.msra.mxu0 0
  %90 = vmatpush.bf16.msra.mxu0 %v74
  %91 = vmatpush.bf16.msra.mxu0 %v73
  %92 = vmatmul.bf16.gmra.mxu0 %v79
  %v93 = vpop.f32.mrf.mxu0
  %v94 = vadd.f32 0.0, %v93
  %v95 = vpop.f32.mrf.mxu0
  %v96 = vadd.f32 0.0, %v95
  %97 = vmatmul.bf16.gmra.mxu0 %v82
  %v98 = vpop.f32.mrf.mxu0
  %v99 = vadd.f32 0.0, %v98
  %v100 = vpop.f32.mrf.mxu0
  %v101 = vadd.f32 0.0, %v100
  %102 = vdwg.mxu0
  %v103 = vpack.c.bf16 %v96, %v94
  %v104 = vpack.c.bf16 %v101, %v99
  %v106 = vperm.slane %v54, 0
  %v124 = vunpack.c.l.b16 %v38
  %v125 = vunpack.c.l.b16 %v39
  %v126 = vunpack.c.l.b16 %v40
  %v127 = vunpack.c.l.b16 %v41
  %v128 = vunpack.c.l.b16 %v42
  %v129 = vunpack.c.l.b16 %v43
  %v130 = vunpack.c.l.b16 %v44
  %v131 = vunpack.c.l.b16 %v45
  %v132 = vunpack.c.l.b16 %v46
  %v133 = vunpack.c.l.b16 %v47
  %v134 = vunpack.c.l.b16 %v48
  %v135 = vunpack.c.l.b16 %v49
  %v136 = vunpack.c.l.b16 %v50
  %v137 = vunpack.c.l.b16 %v51
  %v138 = vunpack.c.l.b16 %v52
  %v139 = vunpack.c.l.b16 %v53
  %v140 = vpack.c.b16 %v125, %v124
  %v141 = vpack.c.b16 %v127, %v126
  %v142 = vpack.c.b16 %v129, %v128
  %v143 = vpack.c.b16 %v131, %v130
  %v144 = vpack.c.b16 %v133, %v132
  %v145 = vpack.c.b16 %v135, %v134
  %v146 = vpack.c.b16 %v137, %v136
  %v147 = vpack.c.b16 %v139, %v138
  %156 = vmatpush.bf16.msra.mxu0 %v147
  %157 = vmatpush.bf16.msra.mxu0 %v146
  %158 = vmatpush.bf16.msra.mxu0 %v145
  %159 = vmatpush.bf16.msra.mxu0 %v144
  %160 = vmatpush.bf16.msra.mxu0 %v143
  %161 = vmatpush.bf16.msra.mxu0 %v142
  %162 = vmatpush.bf16.msra.mxu0 %v141
  %163 = vmatpush.bf16.msra.mxu0 %v140
  %164 = vmatmul.bf16.gmra.mxu0 %v103
  %v165 = vpop.f32.mrf.mxu0
  %v166 = vadd.f32 %v106, %v165
  %v167 = vpop.f32.mrf.mxu0
  %v168 = vadd.f32 %v106, %v167
  %169 = vmatmul.bf16.gmra.mxu0 %v104
  %v170 = vpop.f32.mrf.mxu0
  %v171 = vadd.f32 %v106, %v170
  %v172 = vpop.f32.mrf.mxu0
  %v173 = vadd.f32 %v106, %v172
  %174 = vdwg.mxu0
  %v175 = vmax.f32 %v166, 0.0
  %v176 = vmax.f32 %v168, 0.0
  %v177 = vmax.f32 %v171, 0.0
  %v178 = vmax.f32 %v173, 0.0
  %v179 = vpack.c.bf16 %v176, %v175
  %v180 = vpack.c.bf16 %v178, %v177
  %v181 = vld [vmem:[%s4] sm:$0xf]
  %v182 = vld [vmem:[%s4 + $0x4] sm:$0xf]
  %v183 = vld [vmem:[%s4 + $0x8] sm:$0xf]
  %v184 = vld [vmem:[%s4 + $0xc] sm:$0xf]
  %v185 = vld [vmem:[%s4 + $0x10] sm:$0xf]
  %v186 = vld [vmem:[%s4 + $0x14] sm:$0xf]
  %v187 = vld [vmem:[%s4 + $0x18] sm:$0xf]
  %v188 = vld [vmem:[%s4 + $0x1c] sm:$0xf]
  %v189 = vld [vmem:[%s4 + $0x20] sm:$0xf]
  %v190 = vld [vmem:[%s4 + $0x24] sm:$0xf]
  %v191 = vld [vmem:[%s4 + $0x28] sm:$0xf]
  %v192 = vld [vmem:[%s4 + $0x2c] sm:$0xf]
  %v193 = vld [vmem:[%s4 + $0x30] sm:$0xf]
  %v194 = vld [vmem:[%s4 + $0x34] sm:$0xf]
  %v195 = vld [vmem:[%s4 + $0x38] sm:$0xf]
  %v196 = vld [vmem:[%s4 + $0x3c] sm:$0xf]
  %v197 = vld [vmem:[%s5] sm:$0x1]
  %v214 = vunpack.c.l.b16 %v181
  %v215 = vunpack.c.l.b16 %v182
  %v216 = vunpack.c.l.b16 %v183
  %v217 = vunpack.c.l.b16 %v184
  %v218 = vunpack.c.l.b16 %v185
  %v219 = vunpack.c.l.b16 %v186
  %v220 = vunpack.c.l.b16 %v187
  %v221 = vunpack.c.l.b16 %v188
  %v222 = vunpack.c.l.b16 %v189
  %v223 = vunpack.c.l.b16 %v190
  %v224 = vunpack.c.l.b16 %v191
  %v225 = vunpack.c.l.b16 %v192
  %v226 = vunpack.c.l.b16 %v193
  %v227 = vunpack.c.l.b16 %v194
  %v228 = vunpack.c.l.b16 %v195
  %v229 = vunpack.c.l.b16 %v196
  %v230 = vpack.c.b16 %v215, %v214
  %v231 = vpack.c.b16 %v217, %v216
  %v232 = vpack.c.b16 %v219, %v218
  %v233 = vpack.c.b16 %v221, %v220
  %v234 = vpack.c.b16 %v223, %v222
  %v235 = vpack.c.b16 %v225, %v224
  %v236 = vpack.c.b16 %v227, %v226
  %v237 = vpack.c.b16 %v229, %v228
  %246 = vmatpush.bf16.msra.mxu0 %v237
  %247 = vmatpush.bf16.msra.mxu0 %v236
  %248 = vmatpush.bf16.msra.mxu0 %v235
  %249 = vmatpush.bf16.msra.mxu0 %v234
  %250 = vmatpush.bf16.msra.mxu0 %v233
  %251 = vmatpush.bf16.msra.mxu0 %v232
  %252 = vmatpush.bf16.msra.mxu0 %v231
  %253 = vmatpush.bf16.msra.mxu0 %v230
  %254 = vmatmul.bf16.gmra.mxu0 %v179
  %v255 = vpop.f32.mrf.mxu0
  %v256 = vadd.f32 0.0, %v255
  %v257 = vpop.f32.mrf.mxu0
  %v258 = vadd.f32 0.0, %v257
  %259 = vmatmul.bf16.gmra.mxu0 %v180
  %v260 = vpop.f32.mrf.mxu0
  %v261 = vadd.f32 0.0, %v260
  %v262 = vpop.f32.mrf.mxu0
  %v263 = vadd.f32 0.0, %v262
  %264 = vdwg.mxu0
  %v265 = vpack.c.bf16 %v258, %v256
  %v266 = vpack.c.bf16 %v263, %v261
  %v268 = vperm.slane %v197, 0
  %270 = vmatpush.bf16.msra.mxu0 0
  %271 = vmatpush.bf16.msra.mxu0 0
  %272 = vmatpush.bf16.msra.mxu0 0
  %273 = vmatpush.bf16.msra.mxu0 0
  %274 = vmatpush.bf16.msra.mxu0 0
  %275 = vmatpush.bf16.msra.mxu0 0
  %276 = vmatpush.bf16.msra.mxu0 %v266
  %277 = vmatpush.bf16.msra.mxu0 %v265
  %278 = vmatmul.bf16.gmra.mxu0 %v79
  %v279 = vpop.f32.mrf.mxu0
  %v280 = vadd.f32 %v268, %v279
  %v281 = vpop.f32.mrf.mxu0
  %v282 = vadd.f32 %v268, %v281
  %283 = vmatmul.bf16.gmra.mxu0 %v82
  %v284 = vpop.f32.mrf.mxu0
  %v285 = vadd.f32 %v268, %v284
  %v286 = vpop.f32.mrf.mxu0
  %v287 = vadd.f32 %v268, %v286
  %288 = vdwg.mxu0
  %v289 = vmax.f32 %v280, 0.0
  %v290 = vmax.f32 %v282, 0.0
  %v291 = vmax.f32 %v285, 0.0
  %v292 = vmax.f32 %v287, 0.0
  %v293 = vpack.c.bf16 %v290, %v289
  %v294 = vpack.c.bf16 %v292, %v291
  %v295 = vld [vmem:[%s6] sm:$0xf]
  %v296 = vld [vmem:[%s6 + $0x4] sm:$0xf]
  %v297 = vld [vmem:[%s6 + $0x8] sm:$0xf]
  %v298 = vld [vmem:[%s6 + $0xc] sm:$0xf]
  %v299 = vld [vmem:[%s6 + $0x10] sm:$0xf]
  %v300 = vld [vmem:[%s6 + $0x14] sm:$0xf]
  %v301 = vld [vmem:[%s6 + $0x18] sm:$0xf]
  %v302 = vld [vmem:[%s6 + $0x1c] sm:$0xf]
  %v303 = vld [vmem:[%s6 + $0x20] sm:$0xf]
  %v304 = vld [vmem:[%s6 + $0x24] sm:$0xf]
  %v305 = vld [vmem:[%s6 + $0x28] sm:$0xf]
  %v306 = vld [vmem:[%s6 + $0x2c] sm:$0xf]
  %v307 = vld [vmem:[%s6 + $0x30] sm:$0xf]
  %v308 = vld [vmem:[%s6 + $0x34] sm:$0xf]
  %v309 = vld [vmem:[%s6 + $0x38] sm:$0xf]
  %v310 = vld [vmem:[%s6 + $0x3c] sm:$0xf]
  %v311 = vld [vmem:[%s7] sm:$0x1]
  %v328 = vunpack.c.l.b16 %v295
  %v329 = vunpack.c.l.b16 %v296
  %v330 = vunpack.c.l.b16 %v297
  %v331 = vunpack.c.l.b16 %v298
  %v332 = vunpack.c.l.b16 %v299
  %v333 = vunpack.c.l.b16 %v300
  %v334 = vunpack.c.l.b16 %v301
  %v335 = vunpack.c.l.b16 %v302
  %v336 = vunpack.c.l.b16 %v303
  %v337 = vunpack.c.l.b16 %v304
  %v338 = vunpack.c.l.b16 %v305
  %v339 = vunpack.c.l.b16 %v306
  %v340 = vunpack.c.l.b16 %v307
  %v341 = vunpack.c.l.b16 %v308
  %v342 = vunpack.c.l.b16 %v309
  %v343 = vunpack.c.l.b16 %v310
  %v344 = vpack.c.b16 %v329, %v328
  %v345 = vpack.c.b16 %v331, %v330
  %v346 = vpack.c.b16 %v333, %v332
  %v347 = vpack.c.b16 %v335, %v334
  %v348 = vpack.c.b16 %v337, %v336
  %v349 = vpack.c.b16 %v339, %v338
  %v350 = vpack.c.b16 %v341, %v340
  %v351 = vpack.c.b16 %v343, %v342
  %360 = vmatpush.bf16.msra.mxu0 %v351
  %361 = vmatpush.bf16.msra.mxu0 %v350
  %362 = vmatpush.bf16.msra.mxu0 %v349
  %363 = vmatpush.bf16.msra.mxu0 %v348
  %364 = vmatpush.bf16.msra.mxu0 %v347
  %365 = vmatpush.bf16.msra.mxu0 %v346
  %366 = vmatpush.bf16.msra.mxu0 %v345
  %367 = vmatpush.bf16.msra.mxu0 %v344
  %368 = vmatmul.bf16.gmra.mxu0 %v293
  %v369 = vpop.f32.mrf.mxu0
  %v370 = vadd.f32 0.0, %v369
  %v371 = vpop.f32.mrf.mxu0
  %v372 = vadd.f32 0.0, %v371
  %373 = vmatmul.bf16.gmra.mxu0 %v294
  %v374 = vpop.f32.mrf.mxu0
  %v375 = vadd.f32 0.0, %v374
  %v376 = vpop.f32.mrf.mxu0
  %v377 = vadd.f32 0.0, %v376
  %378 = vdwg.mxu0
  %v379 = vpack.c.bf16 %v372, %v370
  %v380 = vpack.c.bf16 %v377, %v375
  %v382 = vperm.slane %v311, 0
  %384 = vmatpush.bf16.msra.mxu0 0
  %385 = vmatpush.bf16.msra.mxu0 0
  %386 = vmatpush.bf16.msra.mxu0 0
  %387 = vmatpush.bf16.msra.mxu0 0
  %388 = vmatpush.bf16.msra.mxu0 0
  %389 = vmatpush.bf16.msra.mxu0 0
  %390 = vmatpush.bf16.msra.mxu0 %v380
  %391 = vmatpush.bf16.msra.mxu0 %v379
  %392 = vmatmul.bf16.gmra.mxu0 %v79
  %v393 = vpop.f32.mrf.mxu0
  %v394 = vadd.f32 %v382, %v393
  %v395 = vpop.f32.mrf.mxu0
  %v396 = vadd.f32 %v382, %v395
  %397 = vmatmul.bf16.gmra.mxu0 %v82
  %v398 = vpop.f32.mrf.mxu0
  %v399 = vadd.f32 %v382, %v398
  %v400 = vpop.f32.mrf.mxu0
  %v401 = vadd.f32 %v382, %v400
  %402 = vdwg.mxu0
  %v403 = vlaneseq
  %v404 = vand.u32 %v403, 127
  %vm405 = vcmp.lt.s32.totalorder %v404, 4
  %v406 = vsel %vm405, %v394, -1e+30
  %v407 = vsel %vm405, %v396, -1e+30
  %v408 = vsel %vm405, %v399, -1e+30
  %v409 = vsel %vm405, %v401, -1e+30
  %410 = vmax.xlane.f32.xlu0 %v406
  %v411 = vpop.xlane.xlu0 %410
  %412 = vmax.xlane.f32.xlu0 %v407
  %v413 = vpop.xlane.xlu0 %412
  %414 = vmax.xlane.f32.xlu0 %v408
  %v415 = vpop.xlane.xlu0 %414
  %416 = vmax.xlane.f32.xlu0 %v409
  %v417 = vpop.xlane.xlu0 %416
  %v418 = vsub.f32 %v406, %v411
  %v419 = vsub.f32 %v407, %v413
  %v420 = vsub.f32 %v408, %v415
  %v421 = vsub.f32 %v409, %v417
  %v422 = vmul.f32 %v418, 1.442695
  %v423 = vpow.pop %v422
  %v424 = vmul.f32 %v419, 1.442695
  %v425 = vpow.pop %v424
  %v426 = vmul.f32 %v420, 1.442695
  %v427 = vpow.pop %v426
  %v428 = vmul.f32 %v421, 1.442695
  %v429 = vpow.pop %v428
  %v430 = vsel %vm405, %v423, 0.0
  %v431 = vsel %vm405, %v425, 0.0
  %v432 = vsel %vm405, %v427, 0.0
  %v433 = vsel %vm405, %v429, 0.0
  %434 = vadd.xlane.f32.xlu0 %v430
  %v435 = vpop.xlane.xlu0 %434
  %436 = vadd.xlane.f32.xlu0 %v431
  %v437 = vpop.xlane.xlu0 %436
  %438 = vadd.xlane.f32.xlu0 %v432
  %v439 = vpop.xlane.xlu0 %438
  %440 = vadd.xlane.f32.xlu0 %v433
  %v441 = vpop.xlane.xlu0 %440
  %v442 = vlog2.pop %v435
  %v443 = vmul.f32 %v442, 0.6931472
  %v444 = vlog2.pop %v437
  %v445 = vmul.f32 %v444, 0.6931472
  %v446 = vlog2.pop %v439
  %v447 = vmul.f32 %v446, 0.6931472
  %v448 = vlog2.pop %v441
  %v449 = vmul.f32 %v448, 0.6931472
  %v450 = vsub.f32 %v418, %v443
  %v451 = vsub.f32 %v419, %v445
  %v452 = vsub.f32 %v420, %v447
  %v453 = vsub.f32 %v421, %v449
  %454 = vst [vmem:[%s8] sm:$0xff] %v450
  %455 = vst [vmem:[%s8 + $0x8] sm:$0xff] %v451
  %456 = vst [vmem:[%s8 + $0x10] sm:$0xff] %v452
  %457 = vst [vmem:[%s8 + $0x18] sm:$0xff] %v453
  // Predicated region
  $region34: #{fused_gcn_forward.1} parent=0 // pred_check
    _
  $region35: #{fused_gcn_forward.1} parent=0 // pred_check_branch
    %459 = sbr.rel (0) target = $region37
  $region36: #{fused_gcn_forward.1} parent=0 // pred_region
    _
  $region37: #{fused_gcn_forward.1} parent=0 // pred_fallthru
    _
  // Predicated region
  $region38: #{fused_gcn_forward.1} parent=0 // pred_check
    _
  $region39: #{fused_gcn_forward.1} parent=0 // pred_check_branch
    %461 = sbr.rel (0) target = $region41
  $region40: #{fused_gcn_forward.1} parent=0 // pred_region
    _
  $region41: #{fused_gcn_forward.1} parent=0 // pred_fallthru
    _

</llo_original>
